<compile_context>
chip_gen: v5e
topology: v5e:2x2
jax: 0.10.0
libtpu: 0.0.40
codegen_flags: <defaults>
</compile_context>

<pallas_src>
import functools

import numpy as np
import jax
import jax.numpy as jnp
from jax.experimental import pallas as pl
from jax.experimental.pallas import tpu as pltpu


# --------------------------------------------------------------------------- #
# One-time kernel: gcn_x = adj @ (LeakyReLU_0.2(adj @ (sent @ W1)) @ W2)
# Tiled over W2's output columns; h1 is computed once at grid step 0 and held
# in a VMEM scratch that persists across steps.
# --------------------------------------------------------------------------- #
def _gcn_x_kernel(sent_ref, adj_ref, w1_ref, w2_ref, o_ref, h1_ref):
    # sent: [K, Ds], adj: [K, K], w1: [Ds, C], w2 block: [C, tn]
    # o block: [K, tn], h1 scratch: [K, C]
    @pl.when(pl.program_id(0) == 0)
    def _():
        support1 = jnp.dot(sent_ref[...], w1_ref[...],
                           preferred_element_type=jnp.float32)
        h1 = jnp.dot(adj_ref[...], support1, preferred_element_type=jnp.float32)
        h1_ref[...] = jnp.where(h1 >= 0.0, h1, 0.2 * h1)      # LeakyReLU(0.2)

    support2 = jnp.dot(h1_ref[...], w2_ref[...], preferred_element_type=jnp.float32)
    o_ref[...] = jnp.dot(adj_ref[...], support2, preferred_element_type=jnp.float32)


def precompute_gcn_x_t(sentence_emb, adj, w1, w2, *, col_tile=512):
    """Returns gcn_x.T with shape [C, K] (f32). Run once at setup time."""
    K, Ds = sentence_emb.shape
    C = w1.shape[1]
    assert w2.shape == (C, C)
    tn = min(col_tile, C)
    assert C % tn == 0, "in_channels must be divisible by the W2 column tile"

    gcn_x = pl.pallas_call(
        _gcn_x_kernel,
        out_shape=jax.ShapeDtypeStruct((K, C), jnp.float32),
        grid=(C // tn,),
        in_specs=[
            pl.BlockSpec((K, Ds), lambda j: (0, 0)),
            pl.BlockSpec((K, K), lambda j: (0, 0)),
            pl.BlockSpec((Ds, C), lambda j: (0, 0)),
            pl.BlockSpec((C, tn), lambda j: (0, j)),          # stream W2 column tiles
        ],
        out_specs=pl.BlockSpec((K, tn), lambda j: (0, j)),
        scratch_shapes=[pltpu.VMEM((K, C), jnp.float32)],
        compiler_params=pltpu.CompilerParams(
            dimension_semantics=("arbitrary",)),              # h1 written at step 0
    )(sentence_emb.astype(jnp.float32), adj.astype(jnp.float32),
      w1.astype(jnp.float32), w2.astype(jnp.float32))
    return gcn_x.T                                            # [C, K], one-time cost


# --------------------------------------------------------------------------- #
# Hot-path kernel: fused (temporal-avg, spatial-max) pooling + cls matmul.
# --------------------------------------------------------------------------- #
def _pool_cls_kernel(x_ref, gxt_ref, o_ref, *, T, HW):
    # x: [tile_n, C, T*HW], gxt: [C, K], o: [tile_n, 1, K]
    x = x_ref[...].astype(jnp.float32)
    acc = x[:, :, 0:HW]
    for t in range(1, T):                                     # T is small & static
        acc = acc + x[:, :, t * HW:(t + 1) * HW]              # VPU adds (sum over T)
    pooled = jnp.max(acc, axis=2) * (1.0 / T)                 # lane max, single scale
    cls = jnp.dot(pooled, gxt_ref[...],
                  preferred_element_type=jnp.float32)         # [tile_n, K] on MXU
    o_ref[...] = cls[:, None, :]


def bbox_head_titan_forward(bbox, gcn_x_t):
    """bbox [N, C, T, H, W], gcn_x_t [C, K] -> (cls_score [N, K], None)."""
    N, C, T, H, W = bbox.shape
    HW = H * W
    THW = T * HW
    K = gcn_x_t.shape[1]
    tile_n = 8 if N % 8 == 0 else 1                           # fill sublanes when N allows

    x = bbox.reshape(N, C, THW)                               # contiguous: no HBM copy
    kernel = functools.partial(_pool_cls_kernel, T=T, HW=HW)
    out = pl.pallas_call(
        kernel,
        out_shape=jax.ShapeDtypeStruct((N, 1, K), jnp.float32),
        grid=(N // tile_n,),
        in_specs=[
            pl.BlockSpec((tile_n, C, THW), lambda n: (n, 0, 0)),
            pl.BlockSpec((C, K), lambda n: (0, 0)),           # gcn_x.T resident across grid
        ],
        out_specs=pl.BlockSpec((tile_n, 1, K), lambda n: (n, 0, 0)),
        compiler_params=pltpu.CompilerParams(
            dimension_semantics=("parallel",)),               # megacore-friendly on v7x
    )(x.astype(jnp.float32), gcn_x_t.astype(jnp.float32))
    return out.reshape(N, K), None


# ---------------------- deterministic parameter setup ---------------------- #

def make_adj(key, num_classes, t=0.5):
    """Synthetic stand-in for gen_A + gen_adj (same normalization math)."""
    co = jax.random.uniform(key, (num_classes, num_classes), dtype=jnp.float32)
    nums = jnp.sum(co, axis=1, keepdims=True) + 1e-3
    A = co / nums
    A = jnp.where(A < t, 0.0, 1.0)
    A = A * 0.25 / (A.sum(0, keepdims=True) + 1e-6)
    A = A + jnp.eye(num_classes, dtype=jnp.float32)
    # gen_adj: D = diag(A.sum(1)^-0.5);  adj = (A @ D).T @ D
    D = jnp.diag(jnp.power(A.sum(1), -0.5))
    return ((A @ D).T @ D).astype(jnp.float32)


def gcn_weight(key, in_features, out_features):
    """GraphConvolution.reset_parameters: uniform(-stdv, stdv), stdv = 1/sqrt(out)."""
    stdv = 1.0 / np.sqrt(out_features)
    return jax.random.uniform(key, (in_features, out_features), dtype=jnp.float32,
                              minval=-stdv, maxval=stdv)


# ----------------------------------- main ----------------------------------- #

if __name__ == "__main__":
    # Small shapes consistent with the module (scaled down from
    # in_channels=2304, num_classes(adj)=32, sentence_dim=384):
    N, C, T, H, W = 2, 128, 4, 8, 8     # bbox feature map, NCTHW
    K, Ds = 16, 32                      # num graph nodes, sentence embedding dim

    key = jax.random.PRNGKey(0)
    k_bbox, k_sent, k_adj, k_w1, k_w2 = jax.random.split(key, 5)

    bbox = jax.random.normal(k_bbox, (N, C, T, H, W), dtype=jnp.float32)
    sentence_emb = jax.random.normal(k_sent, (K, Ds), dtype=jnp.float32)
    adj = make_adj(k_adj, K)
    w1 = gcn_weight(k_w1, Ds, C)        # gc1_sentence.weight
    w2 = gcn_weight(k_w2, C, C)         # gc2.weight

    # One-time (input-independent) GCN precompute.
    gcn_x_t = jax.block_until_ready(precompute_gcn_x_t(sentence_emb, adj, w1, w2))

    # Hot-path forward: single fused Pallas kernel.
    cls_score, _ = bbox_head_titan_forward(bbox, gcn_x_t)
    cls_score = jax.block_until_ready(cls_score)

    # Pure-JAX reference check of the forward semantics.
    pooled_ref = jnp.max(jnp.mean(bbox, axis=2).reshape(N, C, H * W), axis=2)
    h1_ref = adj @ (sentence_emb @ w1)
    h1_ref = jnp.where(h1_ref >= 0, h1_ref, 0.2 * h1_ref)
    gcn_ref = adj @ (h1_ref @ w2)
    cls_ref = pooled_ref @ gcn_ref.T
    np.testing.assert_allclose(np.asarray(cls_score), np.asarray(cls_ref),
                               rtol=2e-4, atol=2e-4)

    assert cls_score.shape == (N, K)
    print("KERNEL_OK")
</pallas_src>

<mosaic_0001>
module attributes {stable_mosaic.version = 11 : i64} {
  func.func @_gcn_x_kernel(%arg0: i32, %arg1: memref<16x32xf32, #tpu.memory_space<vmem>>, %arg2: memref<16x16xf32, #tpu.memory_space<vmem>>, %arg3: memref<32x128xf32, #tpu.memory_space<vmem>>, %arg4: memref<128x128xf32, #tpu.memory_space<vmem>>, %arg5: memref<16x128xf32, #tpu.memory_space<vmem>>, %arg6: memref<16x128xf32, #tpu.memory_space<vmem>>) attributes {dimension_semantics = [#tpu.dimension_semantics<arbitrary>], iteration_bounds = array<i64: 1>, scalar_prefetch = 0 : i64, scratch_operands = 1 : i64, tpu.core_type = #tpu.core_type<tc>, window_params = [{pipeline_mode = #tpu.pipeline_mode<synchronous>, transform_indices = @transform_0, window_bounds = array<i64: 16, 32>}, {pipeline_mode = #tpu.pipeline_mode<synchronous>, transform_indices = @transform_1, window_bounds = array<i64: 16, 16>}, {pipeline_mode = #tpu.pipeline_mode<synchronous>, transform_indices = @transform_2, window_bounds = array<i64: 32, 128>}, {transform_indices = @transform_3, window_bounds = array<i64: 128, 128>}, {transform_indices = @transform_4, window_bounds = array<i64: 16, 128>}]} {
    %c0_i32 = arith.constant 0 : i32
    %0 = arith.cmpi eq, %arg0, %c0_i32 : i32
    %1 = arith.extui %0 : i1 to i32
    %c0_i32_0 = arith.constant 0 : i32
    %2 = arith.cmpi ne, %1, %c0_i32_0 : i32
    scf.if %2 {
      %c0_9 = arith.constant 0 : index
      %c0_10 = arith.constant 0 : index
      %9 = vector.load %arg1[%c0_9, %c0_10] : memref<16x32xf32, #tpu.memory_space<vmem>>, vector<16x32xf32>
      %c0_11 = arith.constant 0 : index
      %c0_12 = arith.constant 0 : index
      %10 = vector.load %arg3[%c0_11, %c0_12] : memref<32x128xf32, #tpu.memory_space<vmem>>, vector<32x128xf32>
      %cst_13 = arith.constant dense<0.000000e+00> : vector<16x128xf32>
      %11 = tpu.matmul %9, %10, %cst_13 {dimension_numbers = #tpu.dot_dimension_numbers<[1], [0], [0], [1], [0, 0, 1, 1], [], []>} : vector<16x32xf32>, vector<32x128xf32>, vector<16x128xf32> -> vector<16x128xf32>
      %c0_14 = arith.constant 0 : index
      %c0_15 = arith.constant 0 : index
      %12 = vector.load %arg2[%c0_14, %c0_15] : memref<16x16xf32, #tpu.memory_space<vmem>>, vector<16x16xf32>
      %cst_16 = arith.constant dense<0.000000e+00> : vector<16x128xf32>
      %13 = tpu.matmul %12, %11, %cst_16 {dimension_numbers = #tpu.dot_dimension_numbers<[1], [0], [0], [1], [0, 0, 1, 1], [], []>} : vector<16x16xf32>, vector<16x128xf32>, vector<16x128xf32> -> vector<16x128xf32>
      %cst_17 = arith.constant 0.000000e+00 : f32
      %14 = vector.broadcast %cst_17 : f32 to vector<16x128xf32>
      %15 = arith.cmpf oge, %13, %14 : vector<16x128xf32>
      %cst_18 = arith.constant 2.000000e-01 : f32
      %16 = vector.broadcast %cst_18 : f32 to vector<16x128xf32>
      %17 = arith.mulf %16, %13 : vector<16x128xf32>
      %18 = arith.select %15, %13, %17 : vector<16x128xi1>, vector<16x128xf32>
      %c0_19 = arith.constant 0 : index
      %c0_20 = arith.constant 0 : index
      %19 = vector.load %arg6[%c0_19, %c0_20] : memref<16x128xf32, #tpu.memory_space<vmem>>, vector<16x128xf32>
      tpu.vector_store %arg6[%c0_19, %c0_20], %18 {strides = array<i32>} : memref<16x128xf32, #tpu.memory_space<vmem>>, vector<16x128xf32>,
    } else {
    }
    %c0 = arith.constant 0 : index
    %c0_1 = arith.constant 0 : index
    %3 = vector.load %arg6[%c0, %c0_1] : memref<16x128xf32, #tpu.memory_space<vmem>>, vector<16x128xf32>
    %c0_2 = arith.constant 0 : index
    %c0_3 = arith.constant 0 : index
    %4 = vector.load %arg4[%c0_2, %c0_3] : memref<128x128xf32, #tpu.memory_space<vmem>>, vector<128x128xf32>
    %cst = arith.constant dense<0.000000e+00> : vector<16x128xf32>
    %5 = tpu.matmul %3, %4, %cst {dimension_numbers = #tpu.dot_dimension_numbers<[1], [0], [0], [1], [0, 0, 1, 1], [], []>} : vector<16x128xf32>, vector<128x128xf32>, vector<16x128xf32> -> vector<16x128xf32>
    %c0_4 = arith.constant 0 : index
    %c0_5 = arith.constant 0 : index
    %6 = vector.load %arg2[%c0_4, %c0_5] : memref<16x16xf32, #tpu.memory_space<vmem>>, vector<16x16xf32>
    %cst_6 = arith.constant dense<0.000000e+00> : vector<16x128xf32>
    %7 = tpu.matmul %6, %5, %cst_6 {dimension_numbers = #tpu.dot_dimension_numbers<[1], [0], [0], [1], [0, 0, 1, 1], [], []>} : vector<16x16xf32>, vector<16x128xf32>, vector<16x128xf32> -> vector<16x128xf32>
    %c0_7 = arith.constant 0 : index
    %c0_8 = arith.constant 0 : index
    %8 = vector.load %arg5[%c0_7, %c0_8] : memref<16x128xf32, #tpu.memory_space<vmem>>, vector<16x128xf32>
    tpu.vector_store %arg5[%c0_7, %c0_8], %7 {strides = array<i32>} : memref<16x128xf32, #tpu.memory_space<vmem>>, vector<16x128xf32>,
    return
  }
  func.func @transform_0(%arg0: i32) -> (i32, i32) {
    %c0_i32 = arith.constant 0 : i32
    %c0_i32_0 = arith.constant 0 : i32
    %c0_i32_1 = arith.constant 0 : i32
    return %c0_i32, %c0_i32_0 : i32, i32
  }
  func.func @transform_1(%arg0: i32) -> (i32, i32) {
    %c0_i32 = arith.constant 0 : i32
    %c0_i32_0 = arith.constant 0 : i32
    %c0_i32_1 = arith.constant 0 : i32
    return %c0_i32, %c0_i32_0 : i32, i32
  }
  func.func @transform_2(%arg0: i32) -> (i32, i32) {
    %c0_i32 = arith.constant 0 : i32
    %c0_i32_0 = arith.constant 0 : i32
    %c0_i32_1 = arith.constant 0 : i32
    return %c0_i32, %c0_i32_0 : i32, i32
  }
  func.func @transform_3(%arg0: i32) -> (i32, i32) {
    %c0_i32 = arith.constant 0 : i32
    %c0_i32_0 = arith.constant 0 : i32
    return %c0_i32, %arg0 : i32, i32
  }
  func.func @transform_4(%arg0: i32) -> (i32, i32) {
    %c0_i32 = arith.constant 0 : i32
    %c0_i32_0 = arith.constant 0 : i32
    return %c0_i32, %arg0 : i32, i32
  }
}

</mosaic_0001>

<llo_original>
// kernel: tpu_custom_call.1
$region0: #{tpu_custom_call.1}
  #allocation0 [shape = 'u32[]', space=smem, size = 0x4, offset = 0x4, fixed_abs, tag = 'smem constant byte address 0x4 - core index']
  #allocation1 [shape = 'u32[72,128]{1,0:T(1,128)}', space=vmem, size = 0x9000, scoped, tag = 'internal scratch']
  #allocation2 [shape = 'f32[16,128]{1,0:T(8,128)}', space=vmem, size = 0x2000, scoped, tag = 'scratch operand']
  %s0 = inlined_call_operand.hbm [shape: f32[16,32], index: 0, kind: input, shape index: {}]
  %s1 = inlined_call_operand.hbm [shape: f32[16,16], index: 1, kind: input, shape index: {}]
  %s2 = inlined_call_operand.hbm [shape: f32[32,128], index: 2, kind: input, shape index: {}]
  %s3 = inlined_call_operand.hbm [shape: f32[128,128], index: 3, kind: input, shape index: {}]
  %s4 = inlined_call_operand.hbm [shape: f32[16,128], index: 4, kind: output, shape index: {}]
  %s5 = sld [smem:[#allocation0]]
  $region46: #{tpu_custom_call.1} parent=0
    _
  %s7 = ssub.s32 1, %s5
  %s8 = scalar_select 0, %s7, %s5
  $region1: #{tpu_custom_call.1} parent=0
    #allocation3 [shape = 'u8[8192]{0}', space=vmem, size = 0x2000, scoped, tag = 'input window, operand 0, single buffered']
    #allocation4 [shape = 's32[1]{0}', space=sflag, size = 0x4, scoped, tag = 'scoped memory for tpu_custom_call.1']
    #allocation5 [shape = 's32[1]{0}', space=sflag, size = 0x4, scoped, tag = 'scoped memory for tpu_custom_call.1']
    #allocation6 [shape = 'u8[8192]{0}', space=vmem, size = 0x2000, scoped, tag = 'input window, operand 1, single buffered']
    #allocation7 [shape = 's32[1]{0}', space=sflag, size = 0x4, scoped, tag = 'scoped memory for tpu_custom_call.1']
    #allocation8 [shape = 'u8[16384]{0}', space=vmem, size = 0x4000, scoped, tag = 'input window, operand 2, single buffered']
    #allocation9 [shape = 'u8[65536]{0}', space=vmem, size = 0x10000, scoped, tag = 'input window, operand 3, single buffered']
    #allocation10 [shape = 's32[1]{0}', space=sflag, size = 0x4, scoped, tag = 'scoped memory for tpu_custom_call.1']
    #allocation11 [shape = 'u8[8192]{0}', space=vmem, size = 0x2000, scoped, tag = 'output window, operand 0, single buffered']
    %9 = vsyncpa [#allocation4], 0
    %10 = vsyncpa [#allocation7], 0
    %11 = vsyncpa [#allocation10], 0
    %12 = vsyncpa [#allocation5], 0
    // Predicated region
    $region2: #{tpu_custom_call.1} parent=1 // pred_check
      _
    $region3: #{tpu_custom_call.1} parent=1 // pred_check_branch
      %14 = sbr.rel (0) target = $region5
    $region4: #{tpu_custom_call.1} parent=1 // pred_region
      %16 = vsyncadd [#allocation4], 0
      %s17 = sshll.u32 %s0, 4
      %s18 = int_to_ptr.hbm [resolvable:$true] %s17
      %s19 = sshll.u32 [#allocation3], 4
      %s20 = int_to_ptr.vmem [resolvable:$true] %s19
      %25 = dma.hbm_to_vmem [thread:$0]  %s18, 256, %s20, [#allocation4], 128, 128, 8
    $region5: #{tpu_custom_call.1} parent=1 // pred_fallthru
      _
    // Predicated region
    $region6: #{tpu_custom_call.1} parent=1 // pred_check
      _
    $region7: #{tpu_custom_call.1} parent=1 // pred_check_branch
      %27 = sbr.rel (0) target = $region9
    $region8: #{tpu_custom_call.1} parent=1 // pred_region
      %29 = vsyncadd [#allocation7], 0
      %s30 = sshll.u32 %s1, 4
      %s31 = int_to_ptr.hbm [resolvable:$true] %s30
      %s32 = sshll.u32 [#allocation6], 4
      %s33 = int_to_ptr.vmem [resolvable:$true] %s32
      %38 = dma.hbm_to_vmem [thread:$0]  %s31, 256, %s33, [#allocation7], 128, 128, 8
    $region9: #{tpu_custom_call.1} parent=1 // pred_fallthru
      _
    // Predicated region
    $region10: #{tpu_custom_call.1} parent=1 // pred_check
      _
    $region11: #{tpu_custom_call.1} parent=1 // pred_check_branch
      %40 = sbr.rel (0) target = $region13
    $region12: #{tpu_custom_call.1} parent=1 // pred_region
      %42 = vsyncadd [#allocation7], 0
      %s43 = sshll.u32 %s2, 4
      %s44 = int_to_ptr.hbm [resolvable:$true] %s43
      %s45 = sshll.u32 [#allocation8], 4
      %s46 = int_to_ptr.vmem [resolvable:$true] %s45
      %51 = dma.hbm_to_vmem [thread:$0]  %s44, 512, %s46, [#allocation7], 128, 128, 8
    $region13: #{tpu_custom_call.1} parent=1 // pred_fallthru
      _
    // Predicated region
    $region14: #{tpu_custom_call.1} parent=1 // pred_check
      _
    $region15: #{tpu_custom_call.1} parent=1 // pred_check_branch
      %53 = sbr.rel (0) target = $region17
    $region16: #{tpu_custom_call.1} parent=1 // pred_region
      %55 = vsyncadd [#allocation10], 0
      %s56 = sshll.u32 %s3, 4
      %s57 = int_to_ptr.hbm [resolvable:$true] %s56
      %s58 = sshll.u32 [#allocation9], 4
      %s59 = int_to_ptr.vmem [resolvable:$true] %s58
      %64 = dma.hbm_to_vmem [thread:$0]  %s57, 2048, %s59, [#allocation10], 128, 128, 8
    $region17: #{tpu_custom_call.1} parent=1 // pred_fallthru
      _
    // Predicated region
    $region18: #{tpu_custom_call.1} parent=1 // pred_check
      _
    $region19: #{tpu_custom_call.1} parent=1 // pred_check_branch
      %66 = sbr.rel (0) target = $region21
    $region20: #{tpu_custom_call.1} parent=1 // pred_region
      %68 = dma.done [#allocation4], 256
    $region21: #{tpu_custom_call.1} parent=1 // pred_fallthru
      _
    // Predicated region
    $region22: #{tpu_custom_call.1} parent=1 // pred_check
      _
    $region23: #{tpu_custom_call.1} parent=1 // pred_check_branch
      %70 = sbr.rel (0) target = $region25
    $region24: #{tpu_custom_call.1} parent=1 // pred_region
      %72 = dma.done [#allocation7], 256
    $region25: #{tpu_custom_call.1} parent=1 // pred_fallthru
      _
    // Predicated region
    $region26: #{tpu_custom_call.1} parent=1 // pred_check
      _
    $region27: #{tpu_custom_call.1} parent=1 // pred_check_branch
      %74 = sbr.rel (0) target = $region29
    $region28: #{tpu_custom_call.1} parent=1 // pred_region
      %76 = dma.done [#allocation7], 512
    $region29: #{tpu_custom_call.1} parent=1 // pred_fallthru
      _
    // Predicated region
    $region30: #{tpu_custom_call.1} parent=1 // pred_check
      _
    $region31: #{tpu_custom_call.1} parent=1 // pred_check_branch
      %78 = sbr.rel (0) target = $region33
    $region32: #{tpu_custom_call.1} parent=1 // pred_region
      %80 = dma.done [#allocation10], 2048
    $region33: #{tpu_custom_call.1} parent=1 // pred_fallthru
      _
    %p81 = scmp.eq.s32.totalorder 0, 0
    // Predicated region
    $region34: #{tpu_custom_call.1} parent=1 // pred_check
      %p82 = pneg %p81
    $region35: #{tpu_custom_call.1} parent=1 // pred_check_branch
      %84 = sbr.rel (%p82) target = $region37
    $region36: #{tpu_custom_call.1} parent=1 // pred_region
      %v85 = vld [vmem:[#allocation3] sm:$0xff]
      %v86 = vld [vmem:[#allocation3 + $0x8] sm:$0xff]
      %v87 = vld [vmem:[#allocation8] sm:$0xff]
      %v88 = vld [vmem:[#allocation8 + $0x8] sm:$0xff]
      %v89 = vld [vmem:[#allocation8 + $0x10] sm:$0xff]
      %v90 = vld [vmem:[#allocation8 + $0x18] sm:$0xff]
      %vm91 = vcmask 261120
      %v93 = vsel %vm91, %v85, 0
      %v96 = vsel %vm91, %v86, 0
      %98 = vmatpush.msra.mxu0 0.0
      %99 = vmatpush.msra.mxu0 0.0
      %100 = vmatpush.msra.mxu0 0.0
      %101 = vmatpush.msra.mxu0 0.0
      %102 = vmatpush.msra.mxu0 0.0
      %103 = vmatpush.msra.mxu0 0.0
      %104 = vmatpush.msra.mxu0 0.0
      %105 = vmatpush.msra.mxu0 0.0
      %106 = vmatpush.msra.mxu0 0.0
      %107 = vmatpush.msra.mxu0 0.0
      %108 = vmatpush.msra.mxu0 0.0
      %109 = vmatpush.msra.mxu0 0.0
      %110 = vmatpush.msra.mxu0 %v90
      %111 = vmatpush.msra.mxu0 %v89
      %112 = vmatpush.msra.mxu0 %v88
      %113 = vmatpush.msra.mxu0 %v87
      %114 = vmatmul.f32.gmra.mxu0 %v93
      %v115 = vpop.f32.mrf.mxu0
      %v116 = vadd.f32 0.0, %v115
      %117 = vmatmul.f32.gmra.mxu0 %v96
      %v118 = vpop.f32.mrf.mxu0
      %v119 = vadd.f32 0.0, %v118
      %120 = vdwg.mxu0
      %v121 = vld [vmem:[#allocation6] sm:$0xff]
      %v122 = vld [vmem:[#allocation6 + $0x8] sm:$0xff]
      %vm123 = vcmask 130048
      %v125 = vsel %vm123, %v121, 0
      %v128 = vsel %vm123, %v122, 0
      %130 = vmatpush.msra.mxu0 0.0
      %131 = vmatpush.msra.mxu0 0.0
      %132 = vmatpush.msra.mxu0 0.0
      %133 = vmatpush.msra.mxu0 0.0
      %134 = vmatpush.msra.mxu0 0.0
      %135 = vmatpush.msra.mxu0 0.0
      %136 = vmatpush.msra.mxu0 0.0
      %137 = vmatpush.msra.mxu0 0.0
      %138 = vmatpush.msra.mxu0 0.0
      %139 = vmatpush.msra.mxu0 0.0
      %140 = vmatpush.msra.mxu0 0.0
      %141 = vmatpush.msra.mxu0 0.0
      %142 = vmatpush.msra.mxu0 0.0
      %143 = vmatpush.msra.mxu0 0.0
      %144 = vmatpush.msra.mxu0 %v119
      %145 = vmatpush.msra.mxu0 %v116
      %146 = vmatmul.f32.gmra.mxu0 %v125
      %v147 = vpop.f32.mrf.mxu0
      %v148 = vadd.f32 0.0, %v147
      %149 = vmatmul.f32.gmra.mxu0 %v128
      %v150 = vpop.f32.mrf.mxu0
      %v151 = vadd.f32 0.0, %v150
      %152 = vdwg.mxu0
      %vm153 = vcmp.ge.f32.partialorder %v148, 0.0
      %vm154 = vcmp.ge.f32.partialorder %v151, 0.0
      %v155 = vmul.f32 %v148, 0.2
      %v156 = vmul.f32 %v151, 0.2
      %v157 = vsel %vm153, %v148, %v155
      %v158 = vsel %vm154, %v151, %v156
      %159 = vst [vmem:[#allocation2] sm:$0xff] %v157
      %160 = vst [vmem:[#allocation2 + $0x8] sm:$0xff] %v158
    $region37: #{tpu_custom_call.1} parent=1 // pred_fallthru
      _
    %v161 = vld [vmem:[#allocation2] sm:$0xff]
    %v162 = vld [vmem:[#allocation2 + $0x8] sm:$0xff]
    %v163 = vld [vmem:[#allocation9] sm:$0xff]
    %v164 = vld [vmem:[#allocation9 + $0x8] sm:$0xff]
    %v165 = vld [vmem:[#allocation9 + $0x10] sm:$0xff]
    %v166 = vld [vmem:[#allocation9 + $0x18] sm:$0xff]
    %v167 = vld [vmem:[#allocation9 + $0x20] sm:$0xff]
    %v168 = vld [vmem:[#allocation9 + $0x28] sm:$0xff]
    %v169 = vld [vmem:[#allocation9 + $0x30] sm:$0xff]
    %v170 = vld [vmem:[#allocation9 + $0x38] sm:$0xff]
    %v171 = vld [vmem:[#allocation9 + $0x40] sm:$0xff]
    %v172 = vld [vmem:[#allocation9 + $0x48] sm:$0xff]
    %v173 = vld [vmem:[#allocation9 + $0x50] sm:$0xff]
    %v174 = vld [vmem:[#allocation9 + $0x58] sm:$0xff]
    %v175 = vld [vmem:[#allocation9 + $0x60] sm:$0xff]
    %v176 = vld [vmem:[#allocation9 + $0x68] sm:$0xff]
    %v177 = vld [vmem:[#allocation9 + $0x70] sm:$0xff]
    %v178 = vld [vmem:[#allocation9 + $0x78] sm:$0xff]
    %179 = vmatpush.msra.mxu0 %v178
    %180 = vmatpush.msra.mxu0 %v177
    %181 = vmatpush.msra.mxu0 %v176
    %182 = vmatpush.msra.mxu0 %v175
    %183 = vmatpush.msra.mxu0 %v174
    %184 = vmatpush.msra.mxu0 %v173
    %185 = vmatpush.msra.mxu0 %v172
    %186 = vmatpush.msra.mxu0 %v171
    %187 = vmatpush.msra.mxu0 %v170
    %188 = vmatpush.msra.mxu0 %v169
    %189 = vmatpush.msra.mxu0 %v168
    %190 = vmatpush.msra.mxu0 %v167
    %191 = vmatpush.msra.mxu0 %v166
    %192 = vmatpush.msra.mxu0 %v165
    %193 = vmatpush.msra.mxu0 %v164
    %194 = vmatpush.msra.mxu0 %v163
    %195 = vmatmul.f32.gmra.mxu0 %v161
    %v196 = vpop.f32.mrf.mxu0
    %v197 = vadd.f32 0.0, %v196
    %198 = vmatmul.f32.gmra.mxu0 %v162
    %v199 = vpop.f32.mrf.mxu0
    %v200 = vadd.f32 0.0, %v199
    %201 = vdwg.mxu0
    %v202 = vld [vmem:[#allocation6] sm:$0xff]
    %v203 = vld [vmem:[#allocation6 + $0x8] sm:$0xff]
    %vm204 = vcmask 130048
    %v206 = vsel %vm204, %v202, 0
    %v209 = vsel %vm204, %v203, 0
    %211 = vmatpush.msra.mxu0 0.0
    %212 = vmatpush.msra.mxu0 0.0
    %213 = vmatpush.msra.mxu0 0.0
    %214 = vmatpush.msra.mxu0 0.0
    %215 = vmatpush.msra.mxu0 0.0
    %216 = vmatpush.msra.mxu0 0.0
    %217 = vmatpush.msra.mxu0 0.0
    %218 = vmatpush.msra.mxu0 0.0
    %219 = vmatpush.msra.mxu0 0.0
    %220 = vmatpush.msra.mxu0 0.0
    %221 = vmatpush.msra.mxu0 0.0
    %222 = vmatpush.msra.mxu0 0.0
    %223 = vmatpush.msra.mxu0 0.0
    %224 = vmatpush.msra.mxu0 0.0
    %225 = vmatpush.msra.mxu0 %v200
    %226 = vmatpush.msra.mxu0 %v197
    %227 = vmatmul.f32.gmra.mxu0 %v206
    %v228 = vpop.f32.mrf.mxu0
    %v229 = vadd.f32 0.0, %v228
    %230 = vmatmul.f32.gmra.mxu0 %v209
    %v231 = vpop.f32.mrf.mxu0
    %v232 = vadd.f32 0.0, %v231
    %233 = vdwg.mxu0
    %234 = vst [vmem:[#allocation11] sm:$0xff] %v229
    %235 = vst [vmem:[#allocation11 + $0x8] sm:$0xff] %v232
    // Predicated region
    $region38: #{tpu_custom_call.1} parent=1 // pred_check
      _
    $region39: #{tpu_custom_call.1} parent=1 // pred_check_branch
      %237 = sbr.rel (0) target = $region41
    $region40: #{tpu_custom_call.1} parent=1 // pred_region
      %239 = vsyncadd [#allocation5], 0
      %s240 = sshll.u32 [#allocation11], 4
      %s241 = int_to_ptr.vmem [resolvable:$true] %s240
      %s242 = sshll.u32 %s4, 4
      %s243 = int_to_ptr.hbm [resolvable:$true] %s242
      %248 = dma.vmem_to_hbm [thread:$0]  %s241, 256, %s243, [#allocation5], 128, 128, 8
    $region41: #{tpu_custom_call.1} parent=1 // pred_fallthru
      _
    // Predicated region
    $region42: #{tpu_custom_call.1} parent=1 // pred_check
      _
    $region43: #{tpu_custom_call.1} parent=1 // pred_check_branch
      %250 = sbr.rel (0) target = $region45
    $region44: #{tpu_custom_call.1} parent=1 // pred_region
      %252 = dma.done [#allocation5], 256
    $region45: #{tpu_custom_call.1} parent=1 // pred_fallthru
      _
    %253 = vsyncpa [#allocation4], 1
    %254 = vsyncpa [#allocation7], 1
    %255 = vsyncpa [#allocation10], 1
    %256 = vsyncpa [#allocation5], 1

</llo_original>
